<compile_context>
chip_gen: v5e
topology: v5e:2x2
jax: 0.10.0
libtpu: 0.0.40
codegen_flags: <defaults>
</compile_context>

<pallas_src>
import jax
import jax.numpy as jnp
import numpy as np
from jax.experimental import pallas as pl
from jax.experimental.pallas import tpu as pltpu

LANE = 128
SUBLANE = 8


def _round_up(x, m):
    return ((x + m - 1) // m) * m


def _choose_batch_tiling(b, max_tile=2048):
    """Balanced batch tiling: (tile, padded_batch, num_tiles)."""
    b = max(int(b), 1)
    if b <= max_tile:
        tb = _round_up(b, 16)            # single tile, sublane aligned
        return tb, tb, 1
    n_tiles = -(-b // max_tile)          # cdiv
    tb = _round_up(-(-b // n_tiles), LANE)
    return tb, tb * n_tiles, n_tiles


def _pad2d(a, rows, cols, dtype):
    a = jnp.asarray(a, dtype)
    pr, pc = rows - a.shape[0], cols - a.shape[1]
    if pr or pc:
        a = jnp.pad(a, ((0, pr), (0, pc)))
    return a


# ----------------------------------------------------------------------------
# Shared kernel pieces.
# ----------------------------------------------------------------------------
def _mlp_forward(x_ref, w1_ref, b1_ref, w2_ref, b2_ref):
    # x_ref / weights are bf16 (MXU-native), accumulation + epilogue in f32.
    h = jnp.dot(x_ref[...], w1_ref[...], preferred_element_type=jnp.float32)
    h = jnp.maximum(h + b1_ref[...], 0.0)
    z = jnp.dot(h.astype(jnp.bfloat16), w2_ref[...],
                preferred_element_type=jnp.float32) + b2_ref[...]
    return z                                              # (tb, out_dim) f32


def _weighted_dist(z, c_ref, wrow_ref):
    # sum_i w_i * ||z_i - c||^2 for this tile (w_i = +1/Nm, -1/Nh, 0 on pad).
    diff = z - c_ref[...]                                 # (tb, out_dim) f32
    rowsum = jnp.sum(diff * diff, axis=1, keepdims=True)  # (tb, 1) f32
    # (1, tb) @ (tb, 1) -> (1, 1): lane-dense weighted batch reduction.
    return jnp.dot(wrow_ref[0], rowsum, preferred_element_type=jnp.float32)


# ----------------------------------------------------------------------------
# Kernel 1: MLP forward only (module-API parity path).
# ----------------------------------------------------------------------------
def _mlp_kernel(x_ref, w1_ref, b1_ref, w2_ref, b2_ref, o_ref):
    z = _mlp_forward(x_ref, w1_ref, b1_ref, w2_ref, b2_ref)
    o_ref[...] = z.astype(o_ref.dtype)


# ----------------------------------------------------------------------------
# Kernel 2: fused forward + distance, loss-only (no activation writeback).
# ----------------------------------------------------------------------------
def _fused_loss_kernel(x_ref, w1_ref, b1_ref, w2_ref, b2_ref,
                       c_ref, wrow_ref, dist_ref):
    z = _mlp_forward(x_ref, w1_ref, b1_ref, w2_ref, b2_ref)
    dist_ref[...] = _weighted_dist(z, c_ref, wrow_ref).reshape(1, 1, 1)


# ----------------------------------------------------------------------------
# Kernel 3: fused forward + distance, also emitting activations (narrow f32).
# ----------------------------------------------------------------------------
def _fused_fwd_dist_kernel(x_ref, w1_ref, b1_ref, w2_ref, b2_ref,
                           c_ref, wrow_ref, o_ref, dist_ref):
    z = _mlp_forward(x_ref, w1_ref, b1_ref, w2_ref, b2_ref)
    o_ref[...] = z.astype(o_ref.dtype)
    dist_ref[...] = _weighted_dist(z, c_ref, wrow_ref).reshape(1, 1, 1)


# ----------------------------------------------------------------------------
# Kernel 4: distance-only, for compute_loss on pre-computed outputs.
# ----------------------------------------------------------------------------
def _dist_kernel(z_ref, c_ref, wrow_ref, dist_ref):
    dist_ref[...] = _weighted_dist(z_ref[...], c_ref, wrow_ref).reshape(1, 1, 1)


# ----------------------------------------------------------------------------
# The "net": deterministic 2-layer MLP whose forward runs in Pallas.
# ----------------------------------------------------------------------------
class MLPNet:
    def __init__(self, w1, b1, w2, b2, max_batch_tile=2048):
        self.d_in, self.hidden = w1.shape
        self.out_dim = w2.shape[1]
        # Pad only where it is cheap: d_in to a 16-sublane multiple, hidden to
        # 128 lanes (intermediate/MXU tile).  out_dim is NOT lane-padded.
        self.d_in_p = _round_up(self.d_in, 16)
        self.hidden_p = _round_up(self.hidden, LANE)
        self.w1p = _pad2d(w1, self.d_in_p, self.hidden_p, jnp.bfloat16)
        self.b1p = _pad2d(jnp.reshape(b1, (1, -1)), 1, self.hidden_p, jnp.float32)
        self.w2p = _pad2d(w2, self.hidden_p, self.out_dim, jnp.bfloat16)
        self.b2p = _pad2d(jnp.reshape(b2, (1, -1)), 1, self.out_dim, jnp.float32)
        self.max_batch_tile = max_batch_tile

    def _weight_specs(self):
        return [
            pl.BlockSpec((self.d_in_p, self.hidden_p), lambda i: (0, 0)),
            pl.BlockSpec((1, self.hidden_p), lambda i: (0, 0)),
            pl.BlockSpec((self.hidden_p, self.out_dim), lambda i: (0, 0)),
            pl.BlockSpec((1, self.out_dim), lambda i: (0, 0)),
        ]

    def _prep_x(self, x, b_pad):
        # bf16, narrow feature width: far fewer HBM bytes than f32 @ 128 lanes.
        return _pad2d(x, b_pad, self.d_in_p, jnp.bfloat16)

    def __call__(self, x):
        b = x.shape[0]
        tb, b_pad, n_tiles = _choose_batch_tiling(b, self.max_batch_tile)
        xp = self._prep_x(x, b_pad)
        out = pl.pallas_call(
            _mlp_kernel,
            out_shape=jax.ShapeDtypeStruct((b_pad, self.out_dim), jnp.float32),
            grid_spec=pltpu.PrefetchScalarGridSpec(
                num_scalar_prefetch=0,
                grid=(n_tiles,),
                in_specs=[pl.BlockSpec((tb, self.d_in_p), lambda i: (i, 0))]
                         + self._weight_specs(),
                out_specs=pl.BlockSpec((tb, self.out_dim), lambda i: (i, 0)),
            ),
            compiler_params=pltpu.CompilerParams(
                dimension_semantics=("parallel",)),
        )(xp, self.w1p, self.b1p, self.w2p, self.b2p)
        return out[:b]

    def fused_loss_dist(self, x, c_row, wrow, tb, b_pad, n_tiles):
        """Forward + weighted distance, no activation writeback."""
        xp = self._prep_x(x, b_pad)
        partials = pl.pallas_call(
            _fused_loss_kernel,
            out_shape=jax.ShapeDtypeStruct((n_tiles, 1, 1), jnp.float32),
            grid_spec=pltpu.PrefetchScalarGridSpec(
                num_scalar_prefetch=0,
                grid=(n_tiles,),
                in_specs=[pl.BlockSpec((tb, self.d_in_p), lambda i: (i, 0))]
                         + self._weight_specs()
                         + [pl.BlockSpec((1, self.out_dim), lambda i: (0, 0)),
                            pl.BlockSpec((1, 1, tb), lambda i: (i, 0, 0))],
                out_specs=pl.BlockSpec((1, 1, 1), lambda i: (i, 0, 0)),
            ),
            compiler_params=pltpu.CompilerParams(
                dimension_semantics=("parallel",)),
        )(xp, self.w1p, self.b1p, self.w2p, self.b2p, c_row, wrow)
        return jnp.sum(partials)

    def fused_forward_dist(self, x, c_row, wrow, tb, b_pad, n_tiles):
        """Forward + weighted distance, also returning (narrow f32) outputs."""
        xp = self._prep_x(x, b_pad)
        out, partials = pl.pallas_call(
            _fused_fwd_dist_kernel,
            out_shape=(
                jax.ShapeDtypeStruct((b_pad, self.out_dim), jnp.float32),
                jax.ShapeDtypeStruct((n_tiles, 1, 1), jnp.float32),
            ),
            grid_spec=pltpu.PrefetchScalarGridSpec(
                num_scalar_prefetch=0,
                grid=(n_tiles,),
                in_specs=[pl.BlockSpec((tb, self.d_in_p), lambda i: (i, 0))]
                         + self._weight_specs()
                         + [pl.BlockSpec((1, self.out_dim), lambda i: (0, 0)),
                            pl.BlockSpec((1, 1, tb), lambda i: (i, 0, 0))],
                out_specs=(
                    pl.BlockSpec((tb, self.out_dim), lambda i: (i, 0)),
                    pl.BlockSpec((1, 1, 1), lambda i: (i, 0, 0)),
                ),
            ),
            compiler_params=pltpu.CompilerParams(
                dimension_semantics=("parallel",)),
        )(xp, self.w1p, self.b1p, self.w2p, self.b2p, c_row, wrow)
        return out, jnp.sum(partials)


# ----------------------------------------------------------------------------
# JAX equivalent of the PyTorch DeepSVDD module.
# ----------------------------------------------------------------------------
class DeepSVDD:
    def __init__(self, objective, out_dim, R, c, nu):
        assert objective in ("one-class", "soft-boundary"), \
            "Objective must be either 'one-class' or 'soft-boundary'."
        self.objective = objective
        self.out_dim = out_dim
        self.R = jnp.asarray(R, jnp.float32)
        self.nu = float(nu)
        self.c = jnp.asarray(c, jnp.float32) if c is not None else None
        self.c_row = (jnp.reshape(self.c, (1, out_dim))
                      if c is not None else None)

    # --- same semantics as torch: forward just applies the external net -----
    def forward(self, x, net):
        return net(x)

    def _row_weights(self, b_pad, tb, n_tiles, machine_txt_idx, human_txt_idx):
        # Per-row signed weight: +1/Nm machine, -1/Nh human, 0 on pad rows.
        # dist = sum_i w_i * ||z_i - c||^2 == mean(machine) - mean(human).
        # NOTE: assumes machine/human index sets are disjoint (as in the spec).
        m = jnp.asarray(machine_txt_idx, jnp.int32)
        h = jnp.asarray(human_txt_idx, jnp.int32)
        w = jnp.zeros((b_pad,), jnp.float32)
        w = w.at[m].set(1.0 / m.shape[0])
        w = w.at[h].set(-1.0 / h.shape[0])
        return w.reshape(n_tiles, 1, tb)     # lane-dense layout (long axis last)

    def _objective_loss(self, dist):
        # Scalar epilogue in plain JAX: static branch, no per-(nu,R) recompile.
        if self.objective == "soft-boundary":
            r2 = self.R ** 2
            scores = dist - r2
            return r2 + (1.0 / self.nu) * jnp.maximum(scores, 0.0)
        return dist

    # --- module-API path: loss from pre-computed outputs --------------------
    def compute_loss(self, outputs, machine_txt_idx, human_txt_idx):
        assert self.c is not None, "center c must be set before computing loss"
        b = outputs.shape[0]
        tb, b_pad, n_tiles = _choose_batch_tiling(b)
        zp = _pad2d(outputs, b_pad, self.out_dim, jnp.float32)
        wrow = self._row_weights(b_pad, tb, n_tiles,
                                 machine_txt_idx, human_txt_idx)
        partials = pl.pallas_call(
            _dist_kernel,
            out_shape=jax.ShapeDtypeStruct((n_tiles, 1, 1), jnp.float32),
            grid_spec=pltpu.PrefetchScalarGridSpec(
                num_scalar_prefetch=0,
                grid=(n_tiles,),
                in_specs=[
                    pl.BlockSpec((tb, self.out_dim), lambda i: (i, 0)),
                    pl.BlockSpec((1, self.out_dim), lambda i: (0, 0)),
                    pl.BlockSpec((1, 1, tb), lambda i: (i, 0, 0)),
                ],
                out_specs=pl.BlockSpec((1, 1, 1), lambda i: (i, 0, 0)),
            ),
            compiler_params=pltpu.CompilerParams(
                dimension_semantics=("parallel",)),
        )(zp, self.c_row, wrow)
        return self._objective_loss(jnp.sum(partials))

    # --- preferred training path: fused forward + reduction, loss only ------
    def loss(self, x, net, machine_txt_idx, human_txt_idx):
        assert self.c is not None
        b = x.shape[0]
        tb, b_pad, n_tiles = _choose_batch_tiling(b, net.max_batch_tile)
        wrow = self._row_weights(b_pad, tb, n_tiles,
                                 machine_txt_idx, human_txt_idx)
        dist = net.fused_loss_dist(x, self.c_row, wrow, tb, b_pad, n_tiles)
        return self._objective_loss(dist)

    # --- fused path that also returns the activations -----------------------
    def forward_and_loss(self, x, net, machine_txt_idx, human_txt_idx):
        assert self.c is not None
        b = x.shape[0]
        tb, b_pad, n_tiles = _choose_batch_tiling(b, net.max_batch_tile)
        wrow = self._row_weights(b_pad, tb, n_tiles,
                                 machine_txt_idx, human_txt_idx)
        out_p, dist = net.fused_forward_dist(x, self.c_row, wrow,
                                             tb, b_pad, n_tiles)
        return out_p[:b], self._objective_loss(dist)


# ----------------------------------------------------------------------------
# Example run + check against a pure-JAX reference.
# ----------------------------------------------------------------------------
if __name__ == "__main__":
    B, D_in, hidden, out_dim = 8, 32, 64, 16
    key = jax.random.PRNGKey(0)
    k_x, k_w1, k_b1, k_w2, k_b2, k_c = jax.random.split(key, 6)

    x = jax.random.normal(k_x, (B, D_in), jnp.float32)
    w1 = jax.random.normal(k_w1, (D_in, hidden), jnp.float32) * 0.1
    b1 = jax.random.normal(k_b1, (hidden,), jnp.float32) * 0.1
    w2 = jax.random.normal(k_w2, (hidden, out_dim), jnp.float32) * 0.1
    b2 = jax.random.normal(k_b2, (out_dim,), jnp.float32) * 0.1
    c = jax.random.normal(k_c, (out_dim,), jnp.float32) * 0.1

    machine_txt_idx = jnp.arange(0, B // 2)
    human_txt_idx = jnp.arange(B // 2, B)

    net = MLPNet(w1, b1, w2, b2)
    model_sb = DeepSVDD("soft-boundary", out_dim, R=0.7, c=c, nu=0.1)
    model_oc = DeepSVDD("one-class", out_dim, R=0.7, c=c, nu=0.1)

    # module-API parity path: forward() then compute_loss()
    outputs = model_sb.forward(x, net)
    loss_sb = model_sb.compute_loss(outputs, machine_txt_idx, human_txt_idx)
    loss_oc = model_oc.compute_loss(outputs, machine_txt_idx, human_txt_idx)

    # fused loss-only training path (no activation writeback)
    loss_sb_f = model_sb.loss(x, net, machine_txt_idx, human_txt_idx)
    loss_oc_f = model_oc.loss(x, net, machine_txt_idx, human_txt_idx)

    # fused path that also emits activations
    outputs_f, loss_sb_fo = model_sb.forward_and_loss(
        x, net, machine_txt_idx, human_txt_idx)

    jax.block_until_ready(
        (outputs, loss_sb, loss_oc, loss_sb_f, loss_oc_f, outputs_f, loss_sb_fo))

    # pure-JAX reference using the same bf16-matmul / f32-accumulate recipe.
    def ref_forward(xx):
        hh = jnp.dot(xx.astype(jnp.bfloat16), w1.astype(jnp.bfloat16),
                     preferred_element_type=jnp.float32) + b1
        hh = jnp.maximum(hh, 0.0)
        return jnp.dot(hh.astype(jnp.bfloat16), w2.astype(jnp.bfloat16),
                       preferred_element_type=jnp.float32) + b2

    ref_out = ref_forward(x)
    dm = jnp.sum((ref_out[machine_txt_idx] - c) ** 2, axis=1).mean()
    dh = jnp.sum((ref_out[human_txt_idx] - c) ** 2, axis=1).mean()
    ref_dist = dm - dh
    r2 = jnp.float32(0.7) ** 2
    ref_sb = r2 + (1.0 / 0.1) * jnp.maximum(ref_dist - r2, 0.0)
    ref_oc = ref_dist

    np.testing.assert_allclose(np.asarray(outputs), np.asarray(ref_out),
                               rtol=2e-2, atol=2e-2)
    np.testing.assert_allclose(np.asarray(outputs_f), np.asarray(ref_out),
                               rtol=2e-2, atol=2e-2)
    np.testing.assert_allclose(np.asarray(loss_sb), np.asarray(ref_sb),
                               rtol=2e-2, atol=2e-2)
    np.testing.assert_allclose(np.asarray(loss_sb_f), np.asarray(ref_sb),
                               rtol=2e-2, atol=2e-2)
    np.testing.assert_allclose(np.asarray(loss_sb_fo), np.asarray(ref_sb),
                               rtol=2e-2, atol=2e-2)
    np.testing.assert_allclose(np.asarray(loss_oc), np.asarray(ref_oc),
                               rtol=2e-2, atol=2e-2)
    np.testing.assert_allclose(np.asarray(loss_oc_f), np.asarray(ref_oc),
                               rtol=2e-2, atol=2e-2)

    print("KERNEL_OK")
</pallas_src>

<mosaic_0001>
module attributes {stable_mosaic.version = 11 : i64} {
  func.func @_mlp_kernel(%arg0: i32, %arg1: memref<16x32xbf16, #tpu.memory_space<vmem>>, %arg2: memref<32x128xbf16, #tpu.memory_space<vmem>>, %arg3: memref<1x128xf32, #tpu.memory_space<vmem>>, %arg4: memref<128x16xbf16, #tpu.memory_space<vmem>>, %arg5: memref<1x16xf32, #tpu.memory_space<vmem>>, %arg6: memref<16x16xf32, #tpu.memory_space<vmem>>) attributes {dimension_semantics = [#tpu.dimension_semantics<parallel>], iteration_bounds = array<i64: 1>, scalar_prefetch = 0 : i64, scratch_operands = 0 : i64, tpu.core_type = #tpu.core_type<tc>, window_params = [{transform_indices = @transform_0, window_bounds = array<i64: 16, 32>}, {pipeline_mode = #tpu.pipeline_mode<synchronous>, transform_indices = @transform_1, window_bounds = array<i64: 32, 128>}, {pipeline_mode = #tpu.pipeline_mode<synchronous>, transform_indices = @transform_2, window_bounds = array<i64: 1, 128>}, {pipeline_mode = #tpu.pipeline_mode<synchronous>, transform_indices = @transform_3, window_bounds = array<i64: 128, 16>}, {pipeline_mode = #tpu.pipeline_mode<synchronous>, transform_indices = @transform_4, window_bounds = array<i64: 1, 16>}, {transform_indices = @transform_5, window_bounds = array<i64: 16, 16>}]} {
    %c0 = arith.constant 0 : index
    %c0_0 = arith.constant 0 : index
    %0 = vector.load %arg1[%c0, %c0_0] : memref<16x32xbf16, #tpu.memory_space<vmem>>, vector<16x32xbf16>
    %c0_1 = arith.constant 0 : index
    %c0_2 = arith.constant 0 : index
    %1 = vector.load %arg2[%c0_1, %c0_2] : memref<32x128xbf16, #tpu.memory_space<vmem>>, vector<32x128xbf16>
    %cst = arith.constant dense<0.000000e+00> : vector<16x128xf32>
    %2 = tpu.matmul %0, %1, %cst {dimension_numbers = #tpu.dot_dimension_numbers<[1], [0], [0], [1], [0, 0, 1, 1], [], []>} : vector<16x32xbf16>, vector<32x128xbf16>, vector<16x128xf32> -> vector<16x128xf32>
    %c0_3 = arith.constant 0 : index
    %c0_4 = arith.constant 0 : index
    %3 = vector.load %arg3[%c0_3, %c0_4] : memref<1x128xf32, #tpu.memory_space<vmem>>, vector<1x128xf32>
    %4 = vector.broadcast %3 : vector<1x128xf32> to vector<16x128xf32>
    %5 = arith.addf %2, %4 : vector<16x128xf32>
    %cst_5 = arith.constant 0.000000e+00 : f32
    %6 = vector.broadcast %cst_5 : f32 to vector<16x128xf32>
    %7 = arith.maximumf %5, %6 : vector<16x128xf32>
    %8 = arith.truncf %7 : vector<16x128xf32> to vector<16x128xbf16>
    %c0_6 = arith.constant 0 : index
    %c0_7 = arith.constant 0 : index
    %9 = vector.load %arg4[%c0_6, %c0_7] : memref<128x16xbf16, #tpu.memory_space<vmem>>, vector<128x16xbf16>
    %cst_8 = arith.constant dense<0.000000e+00> : vector<16x16xf32>
    %10 = tpu.matmul %8, %9, %cst_8 {dimension_numbers = #tpu.dot_dimension_numbers<[1], [0], [0], [1], [0, 0, 1, 1], [], []>} : vector<16x128xbf16>, vector<128x16xbf16>, vector<16x16xf32> -> vector<16x16xf32>
    %c0_9 = arith.constant 0 : index
    %c0_10 = arith.constant 0 : index
    %11 = vector.load %arg5[%c0_9, %c0_10] : memref<1x16xf32, #tpu.memory_space<vmem>>, vector<1x16xf32>
    %12 = vector.broadcast %11 : vector<1x16xf32> to vector<16x16xf32>
    %13 = arith.addf %10, %12 : vector<16x16xf32>
    %c0_11 = arith.constant 0 : index
    %c0_12 = arith.constant 0 : index
    %14 = vector.load %arg6[%c0_11, %c0_12] : memref<16x16xf32, #tpu.memory_space<vmem>>, vector<16x16xf32>
    tpu.vector_store %arg6[%c0_11, %c0_12], %13 {strides = array<i32>} : memref<16x16xf32, #tpu.memory_space<vmem>>, vector<16x16xf32>,
    return
  }
  func.func @transform_0(%arg0: i32) -> (i32, i32) {
    %c0_i32 = arith.constant 0 : i32
    %c0_i32_0 = arith.constant 0 : i32
    return %arg0, %c0_i32 : i32, i32
  }
  func.func @transform_1(%arg0: i32) -> (i32, i32) {
    %c0_i32 = arith.constant 0 : i32
    %c0_i32_0 = arith.constant 0 : i32
    %c0_i32_1 = arith.constant 0 : i32
    return %c0_i32, %c0_i32_0 : i32, i32
  }
  func.func @transform_2(%arg0: i32) -> (i32, i32) {
    %c0_i32 = arith.constant 0 : i32
    %c0_i32_0 = arith.constant 0 : i32
    %c0_i32_1 = arith.constant 0 : i32
    return %c0_i32, %c0_i32_0 : i32, i32
  }
  func.func @transform_3(%arg0: i32) -> (i32, i32) {
    %c0_i32 = arith.constant 0 : i32
    %c0_i32_0 = arith.constant 0 : i32
    %c0_i32_1 = arith.constant 0 : i32
    return %c0_i32, %c0_i32_0 : i32, i32
  }
  func.func @transform_4(%arg0: i32) -> (i32, i32) {
    %c0_i32 = arith.constant 0 : i32
    %c0_i32_0 = arith.constant 0 : i32
    %c0_i32_1 = arith.constant 0 : i32
    return %c0_i32, %c0_i32_0 : i32, i32
  }
  func.func @transform_5(%arg0: i32) -> (i32, i32) {
    %c0_i32 = arith.constant 0 : i32
    %c0_i32_0 = arith.constant 0 : i32
    return %arg0, %c0_i32 : i32, i32
  }
}

</mosaic_0001>

<llo_original>
// kernel: tpu_custom_call.1
$region0: #{tpu_custom_call.1}
  #allocation0 [shape = 'u32[]', space=smem, size = 0x4, offset = 0x4, fixed_abs, tag = 'smem constant byte address 0x4 - core index']
  #allocation1 [shape = 'u32[72,128]{1,0:T(1,128)}', space=vmem, size = 0x9000, scoped, tag = 'internal scratch']
  %s0 = inlined_call_operand.vmem [shape: bf16[16,32], index: 0, kind: input, shape index: {}]
  %s1 = inlined_call_operand.vmem [shape: bf16[32,128], index: 1, kind: input, shape index: {}]
  %s2 = inlined_call_operand.vmem [shape: f32[1,128], index: 2, kind: input, shape index: {}]
  %s3 = inlined_call_operand.vmem [shape: bf16[128,16], index: 3, kind: input, shape index: {}]
  %s4 = inlined_call_operand.vmem [shape: f32[1,16], index: 4, kind: input, shape index: {}]
  %s5 = inlined_call_operand.hbm [shape: f32[16,16], index: 5, kind: output, shape index: {}]
  %s6 = sld [smem:[#allocation0]]
  $region30: #{tpu_custom_call.1} parent=0
    _
  %s8 = ssub.s32 1, %s6
  %s9 = scalar_select 0, %s8, %s6
  $region1: #{tpu_custom_call.1} parent=0
    #allocation2 [shape = 'u8[8192]{0}', space=vmem, size = 0x2000, scoped, tag = 'output window, operand 0, single buffered']
    #allocation3 [shape = 's32[1]{0}', space=sflag, size = 0x4, scoped, tag = 'scoped memory for tpu_custom_call.1']
    %10 = vsyncpa [#allocation3], 0
    // Predicated region
    $region2: #{tpu_custom_call.1} parent=1 // pred_check
      _
    $region3: #{tpu_custom_call.1} parent=1 // pred_check_branch
      %12 = sbr.rel (0) target = $region5
    $region4: #{tpu_custom_call.1} parent=1 // pred_region
      _
    $region5: #{tpu_custom_call.1} parent=1 // pred_fallthru
      _
    // Predicated region
    $region6: #{tpu_custom_call.1} parent=1 // pred_check
      _
    $region7: #{tpu_custom_call.1} parent=1 // pred_check_branch
      %14 = sbr.rel (0) target = $region9
    $region8: #{tpu_custom_call.1} parent=1 // pred_region
      _
    $region9: #{tpu_custom_call.1} parent=1 // pred_fallthru
      _
    // Predicated region
    $region10: #{tpu_custom_call.1} parent=1 // pred_check
      _
    $region11: #{tpu_custom_call.1} parent=1 // pred_check_branch
      %16 = sbr.rel (0) target = $region13
    $region12: #{tpu_custom_call.1} parent=1 // pred_region
      _
    $region13: #{tpu_custom_call.1} parent=1 // pred_fallthru
      _
    // Predicated region
    $region14: #{tpu_custom_call.1} parent=1 // pred_check
      _
    $region15: #{tpu_custom_call.1} parent=1 // pred_check_branch
      %18 = sbr.rel (0) target = $region17
    $region16: #{tpu_custom_call.1} parent=1 // pred_region
      _
    $region17: #{tpu_custom_call.1} parent=1 // pred_fallthru
      _
    // Predicated region
    $region18: #{tpu_custom_call.1} parent=1 // pred_check
      _
    $region19: #{tpu_custom_call.1} parent=1 // pred_check_branch
      %20 = sbr.rel (0) target = $region21
    $region20: #{tpu_custom_call.1} parent=1 // pred_region
      _
    $region21: #{tpu_custom_call.1} parent=1 // pred_fallthru
      _
    %v22 = vld [vmem:[%s0] sm:$0xf]
    %v23 = vld [vmem:[%s0 + $0x4] sm:$0xf]
    %v24 = vld [vmem:[%s1] sm:$0xf]
    %v25 = vld [vmem:[%s1 + $0x4] sm:$0xf]
    %v26 = vld [vmem:[%s1 + $0x8] sm:$0xf]
    %v27 = vld [vmem:[%s1 + $0xc] sm:$0xf]
    %v28 = vld [vmem:[%s2] sm:$0x1]
    %v30 = vperm.slane %v28, 0
    %v34 = vunpack.c.l.b16 %v22
    %v35 = vunpack.c.l.b16 %v23
    %v36 = vpack.c.b16 %v35, %v34
    %v41 = vunpack.c.l.b16 %v24
    %v42 = vunpack.c.l.b16 %v25
    %v43 = vunpack.c.l.b16 %v26
    %v44 = vunpack.c.l.b16 %v27
    %v45 = vpack.c.b16 %v42, %v41
    %v46 = vpack.c.b16 %v44, %v43
    %vm49 = vcmask 261120
    %v51 = vsel %vm49, %v36, 0
    %53 = vmatpush.bf16.msra.mxu0 0
    %54 = vmatpush.bf16.msra.mxu0 0
    %55 = vmatpush.bf16.msra.mxu0 0
    %56 = vmatpush.bf16.msra.mxu0 0
    %57 = vmatpush.bf16.msra.mxu0 0
    %58 = vmatpush.bf16.msra.mxu0 0
    %59 = vmatpush.bf16.msra.mxu0 %v46
    %60 = vmatpush.bf16.msra.mxu0 %v45
    %61 = vmatmul.bf16.gmra.mxu0 %v51
    %v62 = vpop.f32.mrf.mxu0
    %v63 = vadd.f32 %v30, %v62
    %v64 = vpop.f32.mrf.mxu0
    %v65 = vadd.f32 %v30, %v64
    %66 = vdwg.mxu0
    %v67 = vmax.f32 %v63, 0.0
    %v68 = vmax.f32 %v65, 0.0
    %v69 = vpack.c.bf16 %v68, %v67
    %v70 = vld [vmem:[%s3] sm:$0xf]
    %v71 = vld [vmem:[%s3 + $0x4] sm:$0xf]
    %v72 = vld [vmem:[%s3 + $0x8] sm:$0xf]
    %v73 = vld [vmem:[%s3 + $0xc] sm:$0xf]
    %v74 = vld [vmem:[%s3 + $0x10] sm:$0xf]
    %v75 = vld [vmem:[%s3 + $0x14] sm:$0xf]
    %v76 = vld [vmem:[%s3 + $0x18] sm:$0xf]
    %v77 = vld [vmem:[%s3 + $0x1c] sm:$0xf]
    %v78 = vld [vmem:[%s3 + $0x20] sm:$0xf]
    %v79 = vld [vmem:[%s3 + $0x24] sm:$0xf]
    %v80 = vld [vmem:[%s3 + $0x28] sm:$0xf]
    %v81 = vld [vmem:[%s3 + $0x2c] sm:$0xf]
    %v82 = vld [vmem:[%s3 + $0x30] sm:$0xf]
    %v83 = vld [vmem:[%s3 + $0x34] sm:$0xf]
    %v84 = vld [vmem:[%s3 + $0x38] sm:$0xf]
    %v85 = vld [vmem:[%s3 + $0x3c] sm:$0xf]
    %v86 = vld [vmem:[%s4] sm:$0x1]
    %v88 = vperm.slane %v86, 0
    %v106 = vunpack.c.l.b16 %v70
    %v107 = vunpack.c.l.b16 %v71
    %v108 = vunpack.c.l.b16 %v72
    %v109 = vunpack.c.l.b16 %v73
    %v110 = vunpack.c.l.b16 %v74
    %v111 = vunpack.c.l.b16 %v75
    %v112 = vunpack.c.l.b16 %v76
    %v113 = vunpack.c.l.b16 %v77
    %v114 = vunpack.c.l.b16 %v78
    %v115 = vunpack.c.l.b16 %v79
    %v116 = vunpack.c.l.b16 %v80
    %v117 = vunpack.c.l.b16 %v81
    %v118 = vunpack.c.l.b16 %v82
    %v119 = vunpack.c.l.b16 %v83
    %v120 = vunpack.c.l.b16 %v84
    %v121 = vunpack.c.l.b16 %v85
    %v122 = vpack.c.b16 %v107, %v106
    %v123 = vpack.c.b16 %v109, %v108
    %v124 = vpack.c.b16 %v111, %v110
    %v125 = vpack.c.b16 %v113, %v112
    %v126 = vpack.c.b16 %v115, %v114
    %v127 = vpack.c.b16 %v117, %v116
    %v128 = vpack.c.b16 %v119, %v118
    %v129 = vpack.c.b16 %v121, %v120
    %138 = vmatpush.bf16.msra.mxu0 %v129
    %139 = vmatpush.bf16.msra.mxu0 %v128
    %140 = vmatpush.bf16.msra.mxu0 %v127
    %141 = vmatpush.bf16.msra.mxu0 %v126
    %142 = vmatpush.bf16.msra.mxu0 %v125
    %143 = vmatpush.bf16.msra.mxu0 %v124
    %144 = vmatpush.bf16.msra.mxu0 %v123
    %145 = vmatpush.bf16.msra.mxu0 %v122
    %146 = vmatmul.bf16.gmra.mxu0 %v69
    %v147 = vpop.f32.mrf.mxu0
    %v148 = vadd.f32 %v88, %v147
    %v149 = vpop.f32.mrf.mxu0
    %v150 = vadd.f32 %v88, %v149
    %151 = vdwg.mxu0
    %vm152 = vcmask 130048
    %153 = vst.msk [vmem:[#allocation2] sm:$0xff] %vm152, %v148
    %154 = vst.msk [vmem:[#allocation2 + $0x8] sm:$0xff] %vm152, %v150
    // Predicated region
    $region22: #{tpu_custom_call.1} parent=1 // pred_check
      _
    $region23: #{tpu_custom_call.1} parent=1 // pred_check_branch
      %156 = sbr.rel (0) target = $region25
    $region24: #{tpu_custom_call.1} parent=1 // pred_region
      %158 = vsyncadd [#allocation3], 0
      %s159 = sshll.u32 [#allocation2], 4
      %s160 = int_to_ptr.vmem [resolvable:$true] %s159
      %s161 = sshll.u32 %s5, 4
      %s162 = int_to_ptr.hbm [resolvable:$true] %s161
      %167 = dma.vmem_to_hbm [thread:$0]  %s160, 256, %s162, [#allocation3], 128, 128, 8
    $region25: #{tpu_custom_call.1} parent=1 // pred_fallthru
      _
    // Predicated region
    $region26: #{tpu_custom_call.1} parent=1 // pred_check
      _
    $region27: #{tpu_custom_call.1} parent=1 // pred_check_branch
      %169 = sbr.rel (0) target = $region29
    $region28: #{tpu_custom_call.1} parent=1 // pred_region
      %171 = dma.done [#allocation3], 256
    $region29: #{tpu_custom_call.1} parent=1 // pred_fallthru
      _
    %172 = vsyncpa [#allocation3], 1

</llo_original>
